<compile_context>
chip_gen: v5e
topology: v5e:2x2
jax: 0.10.0
libtpu: 0.0.40
codegen_flags: <defaults>
</compile_context>

<pallas_src>
import functools

import jax
import jax.numpy as jnp
from jax.experimental import pallas as pl
from jax.experimental.pallas import tpu as pltpu


# ---------------------------------------------------------------------------
# Pallas kernel: whole ResBlock forward for one batch-block, fully fused.
#   x_ref : [M, P]              flattened activations (M = B_blk*T, P = padded C*V), f32
#   w_ref : [P, (3+2*kt)*P]     packed fused weights, bf16, column order:
#                               [w_res | w_g1 | w_t1[0..kt-1] | w_g2 | w_t2[0..kt-1]]
#   b_ref : [5, 1, P]           packed biases, f32: [b_res, b_g1, b_t1, b_g2, b_t2]
#   m_ref : [kt, M, 1]          per-tap row-validity masks (1 = keep, 0 = zero)
# ---------------------------------------------------------------------------
def resblock_kernel(x_ref, w_ref, b_ref, m_ref, out_ref, *, kt, pad, p):
    x = x_ref[...]                                    # [M, P] f32
    m_rows = x_ref.shape[0]

    def mm(a, col_lo, col_hi):
        # bf16 MXU operands, f32 accumulation.
        return jnp.dot(a.astype(jnp.bfloat16),
                       w_ref[:, col_lo * p:col_hi * p],
                       preferred_element_type=jnp.float32)

    def leaky(a):                                     # nn.LeakyReLU() default slope 0.01
        return jnp.where(a > 0, a, 0.01 * a)

    def tcn(h, col0, b_idx):
        # One wide [M,P]x[P,kt*P] matmul, then per-tap sublane roll + mask + add.
        z = mm(h, col0, col0 + kt)                    # [M, kt*P]
        acc = None
        for dt in range(kt):                          # static unrolled, kt is small
            zs = z[:, dt * p:(dt + 1) * p]            # lane-aligned static slice
            sh = (pad - dt) % m_rows                  # static nonnegative shift
            if sh:
                # roll the rows (XLU) and zero rows whose source crossed a
                # temporal edge or a sample boundary inside the folded block
                zs = pltpu.roll(zs, shift=sh, axis=0) * m_ref[dt]
            acc = zs if acc is None else acc + zs
        return acc + b_ref[b_idx]                     # bias once, outside the tap loop

    # residual path: 1x1 conv dim_in -> dim_out (on un-activated x, as in the module)
    res = mm(x, 0, 1) + b_ref[0]

    # stgcn1 (dim_in -> dim_in): leaky-relu -> fused gcn -> temporal conv
    h = leaky(x)
    h = mm(h, 1, 2) + b_ref[1]
    h = tcn(h, 2, 2)

    # stgcn2 (dim_in -> dim_out): leaky-relu -> fused gcn -> temporal conv
    h = leaky(h)
    h = mm(h, 2 + kt, 3 + kt) + b_ref[3]
    h = tcn(h, 3 + kt, 4)

    out_ref[...] = (res + 0.1 * h).astype(out_ref.dtype)


# ---------------------------------------------------------------------------
# Host-side weight fusion / layout prep (pure XLA, tiny one-time work)
# ---------------------------------------------------------------------------
def _expand_pointwise(w, v, p):
    # w: [c_out, c_in] 1x1-conv weight -> padded [P, P]: Wf[c*V+u, o*V+u] = w[o, c]
    c_out, c_in = w.shape
    eye = jnp.eye(v, dtype=jnp.float32)
    blk = jnp.einsum('oc,vw->cvow', w.astype(jnp.float32), eye)
    blk = blk.reshape(c_in * v, c_out * v)
    return jnp.zeros((p, p), jnp.float32).at[:c_in * v, :c_out * v].set(blk)


def _expand_gcn(wg, adj, c_out, v, p):
    # wg: [K*c_out, c_in], adj: [K, V, V] -> fused weight
    # Wf[c*V+v, o*V+w] = sum_k wg[k*c_out+o, c] * adj[k, v, w]
    k = adj.shape[0]
    c_in = wg.shape[1]
    wg_k = wg.reshape(k, c_out, c_in).astype(jnp.float32)
    blk = jnp.einsum('koc,kvw->cvow', wg_k, adj.astype(jnp.float32))
    blk = blk.reshape(c_in * v, c_out * v)
    return jnp.zeros((p, p), jnp.float32).at[:c_in * v, :c_out * v].set(blk)


def _expand_bias(b, v, p):
    # b: [c_out] -> [1, P] with b[o] on lanes o*V .. o*V+V-1
    bf = jnp.repeat(b.astype(jnp.float32), v)
    return jnp.zeros((1, p), jnp.float32).at[0, :bf.shape[0]].set(bf)


def _expand_gcn_bias(bg, adj, c_out, v, p):
    # fused gcn bias: b[o*V+w] = sum_{k,v} bg[k*c_out+o] * adj[k, v, w]
    k = adj.shape[0]
    bg_k = bg.reshape(k, c_out).astype(jnp.float32)
    bf = jnp.einsum('ko,kw->ow', bg_k, adj.astype(jnp.float32).sum(axis=1))
    bf = bf.reshape(c_out * v)
    return jnp.zeros((1, p), jnp.float32).at[0, :bf.shape[0]].set(bf)


def _make_tap_masks(kt, pad, t, m_rows):
    # mask[dt, m, 0] = 1 iff the temporal source (m mod T) + dt - pad is inside
    # [0, T); this simultaneously handles temporal zero-padding and the sample
    # boundaries of the b_blk samples folded into the sublane axis.
    tpos = jnp.arange(m_rows, dtype=jnp.int32) % t
    masks = [((tpos + (dt - pad) >= 0) & (tpos + (dt - pad) < t)).astype(jnp.float32)
             for dt in range(kt)]
    return jnp.stack(masks).reshape(kt, m_rows, 1)


def _pack_operands(adj, params, kt, c_in, c_out, v, p):
    mats = ([_expand_pointwise(params['w_res'], v, p),
             _expand_gcn(params['w_g1'], adj, c_in, v, p)]
            + [_expand_pointwise(params['w_t1'][dt], v, p) for dt in range(kt)]
            + [_expand_gcn(params['w_g2'], adj, c_out, v, p)]
            + [_expand_pointwise(params['w_t2'][dt], v, p) for dt in range(kt)])
    w_pack = jnp.concatenate(mats, axis=1).astype(jnp.bfloat16)   # [P, (3+2kt)*P] bf16
    b_pack = jnp.stack(
        [_expand_bias(params['b_res'], v, p),
         _expand_gcn_bias(params['b_g1'], adj, c_in, v, p),
         _expand_bias(params['b_t1'], v, p),
         _expand_gcn_bias(params['b_g2'], adj, c_out, v, p),
         _expand_bias(params['b_t2'], v, p)])                     # [5, 1, P] f32
    return w_pack, b_pack


def _pick_batch_block(n, t, target_rows=1024):
    # Fold several samples into the sublane axis (amortize per-step overhead,
    # tall MXU M ~ target_rows) while keeping >= 2 grid blocks when N allows so
    # both v7x TensorCores get work.  M = b*t must be a multiple of 8 sublanes.
    cap = max(1, min(n, max(1, target_rows // max(t, 1))))
    if n >= 2:
        cap = min(cap, max(1, n // 2))
    for b in range(cap, 0, -1):
        if n % b == 0 and (b * t) % 8 == 0:
            return b
    for b in range(n, 0, -1):          # fallback: any divisor with 8-row alignment
        if n % b == 0 and (b * t) % 8 == 0:
            return b
    return 1


# ---------------------------------------------------------------------------
# Lane-dense entry point: x_flat is [N*T, P] (row n*T+t, lane c*V+v, zero-padded).
# Use this directly when stacking ResBlocks to avoid per-block HBM layout passes.
# ---------------------------------------------------------------------------
def resblock_forward_flat(x_flat, w_pack, b_pack, *, kt, pad, t, p, batch_block=None):
    nt = x_flat.shape[0]
    assert nt % t == 0
    n = nt // t
    b_blk = batch_block if batch_block is not None else _pick_batch_block(n, t)
    assert n % b_blk == 0
    m_blk = b_blk * t
    assert m_blk % 8 == 0, "B_blk*T must be a multiple of 8 sublanes"
    n_blocks = n // b_blk
    nw = 3 + 2 * kt

    tap_masks = _make_tap_masks(kt, pad, t, m_blk)
    kernel = functools.partial(resblock_kernel, kt=kt, pad=pad, p=p)

    return pl.pallas_call(
        kernel,
        out_shape=jax.ShapeDtypeStruct((nt, p), jnp.float32),
        grid_spec=pltpu.PrefetchScalarGridSpec(
            num_scalar_prefetch=0,
            grid=(n_blocks,),
            in_specs=[
                pl.BlockSpec((m_blk, p), lambda i: (i, 0)),        # activations
                pl.BlockSpec((p, nw * p), lambda i: (0, 0)),       # fused weights (const)
                pl.BlockSpec((5, 1, p), lambda i: (0, 0, 0)),      # biases (const)
                pl.BlockSpec((kt, m_blk, 1), lambda i: (0, 0, 0)), # tap masks (const)
            ],
            out_specs=pl.BlockSpec((m_blk, p), lambda i: (i, 0)),
        ),
        compiler_params=pltpu.CompilerParams(
            dimension_semantics=("parallel",),
            vmem_limit_bytes=32 * 1024 * 1024),
    )(x_flat, w_pack, b_pack, tap_masks)


def resblock_forward(x, adj, params, *, kt, pad, batch_block=None):
    n, c_in, t, v = x.shape
    c_out = params['w_res'].shape[0]
    assert 2 * pad == kt - 1, "stride-1 'same' temporal conv required (T preserved)"
    # TODO(synk): non-unit temporal stride (T_out != T) is not supported; the
    # ResBlock residual add itself requires T to be preserved anyway.

    p = max(128, -(-max(c_in, c_out) * v // 128) * 128)            # padded lane width
    w_pack, b_pack = _pack_operands(adj, params, kt, c_in, c_out, v, p)

    # TODO(synk): when stacking ResBlocks, keep activations in the lane-dense
    # [N*T, P] layout between blocks (call resblock_forward_flat directly) so the
    # transpose/pad below happens once per network, not once per block.
    x_flat = x.astype(jnp.float32).transpose(0, 2, 1, 3).reshape(n * t, c_in * v)
    x_flat = jnp.pad(x_flat, ((0, 0), (0, p - c_in * v)))

    out_flat = resblock_forward_flat(x_flat, w_pack, b_pack, kt=kt, pad=pad,
                                     t=t, p=p, batch_block=batch_block)

    out = out_flat[:, :c_out * v].reshape(n, t, c_out, v).transpose(0, 2, 1, 3)
    return out.astype(x.dtype)


# ---------------------------------------------------------------------------
# Pure-JAX reference (same math as the PyTorch module) for verification
# ---------------------------------------------------------------------------
def _ref_pointwise(x, w, b):
    return jnp.einsum('oc,nctv->notv', w, x) + b[None, :, None, None]


def _ref_gcn(x, w, b, adj):
    k = adj.shape[0]
    y = _ref_pointwise(x, w, b)                   # [N, K*Co, T, V]
    n, kc, t, v = y.shape
    y = y.reshape(n, k, kc // k, t, v)
    return jnp.einsum('nkctv,kvw->nctw', y, adj)


def _ref_tcn(x, w, b, kt, pad):
    n, ci, t, v = x.shape
    xp = jnp.pad(x, ((0, 0), (0, 0), (pad, pad), (0, 0)))
    t_out = t + 2 * pad - kt + 1
    out = 0.0
    for dt in range(kt):
        out = out + jnp.einsum('oc,nctv->notv', w[dt],
                               xp[:, :, dt:dt + t_out, :])
    return out + b[None, :, None, None]


def _ref_leaky(x):
    return jnp.where(x > 0, x, 0.01 * x)


def ref_resblock(x, adj, params, kt, pad):
    res = _ref_pointwise(x, params['w_res'], params['b_res'])
    h = _ref_leaky(x)
    h = _ref_gcn(h, params['w_g1'], params['b_g1'], adj)
    h = _ref_tcn(h, params['w_t1'], params['b_t1'], kt, pad)
    h = _ref_leaky(h)
    h = _ref_gcn(h, params['w_g2'], params['b_g2'], adj)
    h = _ref_tcn(h, params['w_t2'], params['b_t2'], kt, pad)
    return res + 0.1 * h


# ---------------------------------------------------------------------------
if __name__ == "__main__":
    # ResBlock(dim_in=4, dim_out=8, kernel_size=(3, 2), padding=(1, 0), stride=(1, 1))
    N, dim_in, dim_out, T, V = 8, 4, 8, 8, 16
    K, kt, pad = 2, 3, 1
    f32 = jnp.float32

    key = jax.random.PRNGKey(0)
    ks = jax.random.split(key, 12)
    x = jax.random.normal(ks[0], (N, dim_in, T, V), f32)
    adj = jax.random.normal(ks[1], (K, V, V), f32) * 0.3

    params = {
        # residual 1x1 conv: weight [dim_out, dim_in], bias [dim_out]
        'w_res': jax.random.normal(ks[2], (dim_out, dim_in), f32) * 0.1,
        'b_res': jax.random.normal(ks[3], (dim_out,), f32) * 0.05,
        # stgcn1.gcn (1x1 conv to K*dim_in) and stgcn1.tcn (kt x 1 conv)
        'w_g1': jax.random.normal(ks[4], (K * dim_in, dim_in), f32) * 0.1,
        'b_g1': jax.random.normal(ks[5], (K * dim_in,), f32) * 0.05,
        'w_t1': jax.random.normal(ks[6], (kt, dim_in, dim_in), f32) * 0.1,
        'b_t1': jax.random.normal(ks[7], (dim_in,), f32) * 0.05,
        # stgcn2.gcn (1x1 conv to K*dim_out) and stgcn2.tcn (kt x 1 conv)
        'w_g2': jax.random.normal(ks[8], (K * dim_out, dim_in), f32) * 0.1,
        'b_g2': jax.random.normal(ks[9], (K * dim_out,), f32) * 0.05,
        'w_t2': jax.random.normal(ks[10], (kt, dim_out, dim_out), f32) * 0.1,
        'b_t2': jax.random.normal(ks[11], (dim_out,), f32) * 0.05,
    }

    out = resblock_forward(x, adj, params, kt=kt, pad=pad)
    out = jax.block_until_ready(out)

    ref = ref_resblock(x, adj, params, kt, pad)
    assert out.shape == (N, dim_out, T, V), out.shape
    # bf16 MXU operands => slightly looser tolerance than the pure-f32 version
    if not jnp.allclose(out, ref, rtol=3e-2, atol=3e-2):
        err = jnp.max(jnp.abs(out - ref))
        raise AssertionError(f"Pallas ResBlock mismatch vs JAX reference (max err {err})")

    print("KERNEL_OK")
</pallas_src>

<mosaic_0001>
module attributes {stable_mosaic.version = 11 : i64} {
  func.func @resblock_kernel(%arg0: i32, %arg1: memref<32x128xf32, #tpu.memory_space<vmem>>, %arg2: memref<128x1152xbf16, #tpu.memory_space<vmem>>, %arg3: memref<5x1x128xf32, #tpu.memory_space<vmem>>, %arg4: memref<3x32x1xf32, #tpu.memory_space<vmem>>, %arg5: memref<32x128xf32, #tpu.memory_space<vmem>>) attributes {dimension_semantics = [#tpu.dimension_semantics<parallel>], iteration_bounds = array<i64: 2>, scalar_prefetch = 0 : i64, scratch_operands = 0 : i64, tpu.core_type = #tpu.core_type<tc>, window_params = [{transform_indices = @transform_0, window_bounds = array<i64: 32, 128>}, {pipeline_mode = #tpu.pipeline_mode<synchronous>, transform_indices = @transform_1, window_bounds = array<i64: 128, 1152>}, {pipeline_mode = #tpu.pipeline_mode<synchronous>, transform_indices = @transform_2, window_bounds = array<i64: 5, 1, 128>}, {pipeline_mode = #tpu.pipeline_mode<synchronous>, transform_indices = @transform_3, window_bounds = array<i64: 3, 32, 1>}, {transform_indices = @transform_4, window_bounds = array<i64: 32, 128>}]} {
    %c0 = arith.constant 0 : index
    %c0_0 = arith.constant 0 : index
    %0 = vector.load %arg1[%c0, %c0_0] : memref<32x128xf32, #tpu.memory_space<vmem>>, vector<32x128xf32>
    %1 = arith.truncf %0 : vector<32x128xf32> to vector<32x128xbf16>
    %c0_1 = arith.constant 0 : index
    %c0_2 = arith.constant 0 : index
    %2 = vector.load %arg2[%c0_1, %c0_2] : memref<128x1152xbf16, #tpu.memory_space<vmem>>, vector<128x128xbf16>
    %cst = arith.constant dense<0.000000e+00> : vector<32x128xf32>
    %3 = tpu.matmul %1, %2, %cst {dimension_numbers = #tpu.dot_dimension_numbers<[1], [0], [0], [1], [0, 0, 1, 1], [], []>} : vector<32x128xbf16>, vector<128x128xbf16>, vector<32x128xf32> -> vector<32x128xf32>
    %c0_3 = arith.constant 0 : index
    %c0_4 = arith.constant 0 : index
    %c0_5 = arith.constant 0 : index
    %4 = vector.load %arg3[%c0_3, %c0_4, %c0_5] : memref<5x1x128xf32, #tpu.memory_space<vmem>>, vector<1x1x128xf32>
    %5 = vector.shape_cast %4 : vector<1x1x128xf32> to vector<1x128xf32>
    %6 = vector.broadcast %5 : vector<1x128xf32> to vector<32x128xf32>
    %7 = arith.addf %3, %6 : vector<32x128xf32>
    %cst_6 = arith.constant 0.000000e+00 : f32
    %8 = vector.broadcast %cst_6 : f32 to vector<32x128xf32>
    %9 = arith.cmpf ogt, %0, %8 : vector<32x128xf32>
    %cst_7 = arith.constant 0.00999999977 : f32
    %10 = vector.broadcast %cst_7 : f32 to vector<32x128xf32>
    %11 = arith.mulf %10, %0 : vector<32x128xf32>
    %12 = arith.select %9, %0, %11 : vector<32x128xi1>, vector<32x128xf32>
    %13 = arith.truncf %12 : vector<32x128xf32> to vector<32x128xbf16>
    %c0_8 = arith.constant 0 : index
    %c128 = arith.constant 128 : index
    %14 = vector.load %arg2[%c0_8, %c128] : memref<128x1152xbf16, #tpu.memory_space<vmem>>, vector<128x128xbf16>
    %cst_9 = arith.constant dense<0.000000e+00> : vector<32x128xf32>
    %15 = tpu.matmul %13, %14, %cst_9 {dimension_numbers = #tpu.dot_dimension_numbers<[1], [0], [0], [1], [0, 0, 1, 1], [], []>} : vector<32x128xbf16>, vector<128x128xbf16>, vector<32x128xf32> -> vector<32x128xf32>
    %c1 = arith.constant 1 : index
    %c0_10 = arith.constant 0 : index
    %c0_11 = arith.constant 0 : index
    %16 = vector.load %arg3[%c1, %c0_10, %c0_11] : memref<5x1x128xf32, #tpu.memory_space<vmem>>, vector<1x1x128xf32>
    %17 = vector.shape_cast %16 : vector<1x1x128xf32> to vector<1x128xf32>
    %18 = vector.broadcast %17 : vector<1x128xf32> to vector<32x128xf32>
    %19 = arith.addf %15, %18 : vector<32x128xf32>
    %20 = arith.truncf %19 : vector<32x128xf32> to vector<32x128xbf16>
    %c0_12 = arith.constant 0 : index
    %c256 = arith.constant 256 : index
    %21 = vector.load %arg2[%c0_12, %c256] : memref<128x1152xbf16, #tpu.memory_space<vmem>>, vector<128x384xbf16>
    %cst_13 = arith.constant dense<0.000000e+00> : vector<32x384xf32>
    %22 = tpu.matmul %20, %21, %cst_13 {dimension_numbers = #tpu.dot_dimension_numbers<[1], [0], [0], [1], [0, 0, 1, 1], [], []>} : vector<32x128xbf16>, vector<128x384xbf16>, vector<32x384xf32> -> vector<32x384xf32>
    %23 = vector.extract_strided_slice %22 {offsets = [0, 0], sizes = [32, 128], strides = [1, 1]} : vector<32x384xf32> to vector<32x128xf32>
    %c1_i32 = arith.constant 1 : i32
    %24 = tpu.dynamic_rotate %23 by %c1_i32 dim 0 : vector<32x128xf32>, i32 -> vector<32x128xf32>
    %c0_14 = arith.constant 0 : index
    %c0_15 = arith.constant 0 : index
    %c0_16 = arith.constant 0 : index
    %25 = vector.load %arg4[%c0_14, %c0_15, %c0_16] : memref<3x32x1xf32, #tpu.memory_space<vmem>>, vector<1x32x1xf32>
    %26 = vector.shape_cast %25 : vector<1x32x1xf32> to vector<32x1xf32>
    %27 = vector.broadcast %26 : vector<32x1xf32> to vector<32x128xf32>
    %28 = arith.mulf %24, %27 : vector<32x128xf32>
    %29 = vector.extract_strided_slice %22 {offsets = [0, 128], sizes = [32, 128], strides = [1, 1]} : vector<32x384xf32> to vector<32x128xf32>
    %30 = arith.addf %28, %29 : vector<32x128xf32>
    %31 = vector.extract_strided_slice %22 {offsets = [0, 256], sizes = [32, 128], strides = [1, 1]} : vector<32x384xf32> to vector<32x128xf32>
    %c31_i32 = arith.constant 31 : i32
    %32 = tpu.dynamic_rotate %31 by %c31_i32 dim 0 : vector<32x128xf32>, i32 -> vector<32x128xf32>
    %c2 = arith.constant 2 : index
    %c0_17 = arith.constant 0 : index
    %c0_18 = arith.constant 0 : index
    %33 = vector.load %arg4[%c2, %c0_17, %c0_18] : memref<3x32x1xf32, #tpu.memory_space<vmem>>, vector<1x32x1xf32>
    %34 = vector.shape_cast %33 : vector<1x32x1xf32> to vector<32x1xf32>
    %35 = vector.broadcast %34 : vector<32x1xf32> to vector<32x128xf32>
    %36 = arith.mulf %32, %35 : vector<32x128xf32>
    %37 = arith.addf %30, %36 : vector<32x128xf32>
    %c2_19 = arith.constant 2 : index
    %c0_20 = arith.constant 0 : index
    %c0_21 = arith.constant 0 : index
    %38 = vector.load %arg3[%c2_19, %c0_20, %c0_21] : memref<5x1x128xf32, #tpu.memory_space<vmem>>, vector<1x1x128xf32>
    %39 = vector.shape_cast %38 : vector<1x1x128xf32> to vector<1x128xf32>
    %40 = vector.broadcast %39 : vector<1x128xf32> to vector<32x128xf32>
    %41 = arith.addf %37, %40 : vector<32x128xf32>
    %cst_22 = arith.constant 0.000000e+00 : f32
    %42 = vector.broadcast %cst_22 : f32 to vector<32x128xf32>
    %43 = arith.cmpf ogt, %41, %42 : vector<32x128xf32>
    %cst_23 = arith.constant 0.00999999977 : f32
    %44 = vector.broadcast %cst_23 : f32 to vector<32x128xf32>
    %45 = arith.mulf %44, %41 : vector<32x128xf32>
    %46 = arith.select %43, %41, %45 : vector<32x128xi1>, vector<32x128xf32>
    %47 = arith.truncf %46 : vector<32x128xf32> to vector<32x128xbf16>
    %c0_24 = arith.constant 0 : index
    %c640 = arith.constant 640 : index
    %48 = vector.load %arg2[%c0_24, %c640] : memref<128x1152xbf16, #tpu.memory_space<vmem>>, vector<128x128xbf16>
    %cst_25 = arith.constant dense<0.000000e+00> : vector<32x128xf32>
    %49 = tpu.matmul %47, %48, %cst_25 {dimension_numbers = #tpu.dot_dimension_numbers<[1], [0], [0], [1], [0, 0, 1, 1], [], []>} : vector<32x128xbf16>, vector<128x128xbf16>, vector<32x128xf32> -> vector<32x128xf32>
    %c3 = arith.constant 3 : index
    %c0_26 = arith.constant 0 : index
    %c0_27 = arith.constant 0 : index
    %50 = vector.load %arg3[%c3, %c0_26, %c0_27] : memref<5x1x128xf32, #tpu.memory_space<vmem>>, vector<1x1x128xf32>
    %51 = vector.shape_cast %50 : vector<1x1x128xf32> to vector<1x128xf32>
    %52 = vector.broadcast %51 : vector<1x128xf32> to vector<32x128xf32>
    %53 = arith.addf %49, %52 : vector<32x128xf32>
    %54 = arith.truncf %53 : vector<32x128xf32> to vector<32x128xbf16>
    %c0_28 = arith.constant 0 : index
    %c768 = arith.constant 768 : index
    %55 = vector.load %arg2[%c0_28, %c768] : memref<128x1152xbf16, #tpu.memory_space<vmem>>, vector<128x384xbf16>
    %cst_29 = arith.constant dense<0.000000e+00> : vector<32x384xf32>
    %56 = tpu.matmul %54, %55, %cst_29 {dimension_numbers = #tpu.dot_dimension_numbers<[1], [0], [0], [1], [0, 0, 1, 1], [], []>} : vector<32x128xbf16>, vector<128x384xbf16>, vector<32x384xf32> -> vector<32x384xf32>
    %57 = vector.extract_strided_slice %56 {offsets = [0, 0], sizes = [32, 128], strides = [1, 1]} : vector<32x384xf32> to vector<32x128xf32>
    %c1_i32_30 = arith.constant 1 : i32
    %58 = tpu.dynamic_rotate %57 by %c1_i32_30 dim 0 : vector<32x128xf32>, i32 -> vector<32x128xf32>
    %c0_31 = arith.constant 0 : index
    %c0_32 = arith.constant 0 : index
    %c0_33 = arith.constant 0 : index
    %59 = vector.load %arg4[%c0_31, %c0_32, %c0_33] : memref<3x32x1xf32, #tpu.memory_space<vmem>>, vector<1x32x1xf32>
    %60 = vector.shape_cast %59 : vector<1x32x1xf32> to vector<32x1xf32>
    %61 = vector.broadcast %60 : vector<32x1xf32> to vector<32x128xf32>
    %62 = arith.mulf %58, %61 : vector<32x128xf32>
    %63 = vector.extract_strided_slice %56 {offsets = [0, 128], sizes = [32, 128], strides = [1, 1]} : vector<32x384xf32> to vector<32x128xf32>
    %64 = arith.addf %62, %63 : vector<32x128xf32>
    %65 = vector.extract_strided_slice %56 {offsets = [0, 256], sizes = [32, 128], strides = [1, 1]} : vector<32x384xf32> to vector<32x128xf32>
    %c31_i32_34 = arith.constant 31 : i32
    %66 = tpu.dynamic_rotate %65 by %c31_i32_34 dim 0 : vector<32x128xf32>, i32 -> vector<32x128xf32>
    %c2_35 = arith.constant 2 : index
    %c0_36 = arith.constant 0 : index
    %c0_37 = arith.constant 0 : index
    %67 = vector.load %arg4[%c2_35, %c0_36, %c0_37] : memref<3x32x1xf32, #tpu.memory_space<vmem>>, vector<1x32x1xf32>
    %68 = vector.shape_cast %67 : vector<1x32x1xf32> to vector<32x1xf32>
    %69 = vector.broadcast %68 : vector<32x1xf32> to vector<32x128xf32>
    %70 = arith.mulf %66, %69 : vector<32x128xf32>
    %71 = arith.addf %64, %70 : vector<32x128xf32>
    %c4 = arith.constant 4 : index
    %c0_38 = arith.constant 0 : index
    %c0_39 = arith.constant 0 : index
    %72 = vector.load %arg3[%c4, %c0_38, %c0_39] : memref<5x1x128xf32, #tpu.memory_space<vmem>>, vector<1x1x128xf32>
    %73 = vector.shape_cast %72 : vector<1x1x128xf32> to vector<1x128xf32>
    %74 = vector.broadcast %73 : vector<1x128xf32> to vector<32x128xf32>
    %75 = arith.addf %71, %74 : vector<32x128xf32>
    %cst_40 = arith.constant 1.000000e-01 : f32
    %76 = vector.broadcast %cst_40 : f32 to vector<32x128xf32>
    %77 = arith.mulf %76, %75 : vector<32x128xf32>
    %78 = arith.addf %7, %77 : vector<32x128xf32>
    %c0_41 = arith.constant 0 : index
    %c0_42 = arith.constant 0 : index
    %79 = vector.load %arg5[%c0_41, %c0_42] : memref<32x128xf32, #tpu.memory_space<vmem>>, vector<32x128xf32>
    tpu.vector_store %arg5[%c0_41, %c0_42], %78 {strides = array<i32>} : memref<32x128xf32, #tpu.memory_space<vmem>>, vector<32x128xf32>,
    return
  }
  func.func @transform_0(%arg0: i32) -> (i32, i32) {
    %c0_i32 = arith.constant 0 : i32
    %c0_i32_0 = arith.constant 0 : i32
    return %arg0, %c0_i32 : i32, i32
  }
  func.func @transform_1(%arg0: i32) -> (i32, i32) {
    %c0_i32 = arith.constant 0 : i32
    %c0_i32_0 = arith.constant 0 : i32
    %c0_i32_1 = arith.constant 0 : i32
    return %c0_i32, %c0_i32_0 : i32, i32
  }
  func.func @transform_2(%arg0: i32) -> (i32, i32, i32) {
    %c0_i32 = arith.constant 0 : i32
    %c0_i32_0 = arith.constant 0 : i32
    %c0_i32_1 = arith.constant 0 : i32
    %c0_i32_2 = arith.constant 0 : i32
    return %c0_i32, %c0_i32_0, %c0_i32_1 : i32, i32, i32
  }
  func.func @transform_3(%arg0: i32) -> (i32, i32, i32) {
    %c0_i32 = arith.constant 0 : i32
    %c0_i32_0 = arith.constant 0 : i32
    %c0_i32_1 = arith.constant 0 : i32
    %c0_i32_2 = arith.constant 0 : i32
    return %c0_i32, %c0_i32_0, %c0_i32_1 : i32, i32, i32
  }
  func.func @transform_4(%arg0: i32) -> (i32, i32) {
    %c0_i32 = arith.constant 0 : i32
    %c0_i32_0 = arith.constant 0 : i32
    return %arg0, %c0_i32 : i32, i32
  }
}

</mosaic_0001>

<llo_original>
// kernel: tpu_custom_call.1
$region0: #{tpu_custom_call.1}
  #allocation0 [shape = 'u32[]', space=smem, size = 0x4, offset = 0x4, fixed_abs, tag = 'smem constant byte address 0x4 - core index']
  #allocation1 [shape = 'u32[72,128]{1,0:T(1,128)}', space=vmem, size = 0x9000, scoped, tag = 'internal scratch']
  %s0 = inlined_call_operand.vmem [shape: f32[64,128], index: 0, kind: input, shape index: {}]
  %s1 = inlined_call_operand.hbm [shape: bf16[128,1152], index: 1, kind: input, shape index: {}]
  %s2 = inlined_call_operand.vmem [shape: f32[5,1,128], index: 2, kind: input, shape index: {}]
  %s3 = inlined_call_operand.vmem [shape: f32[3,32,1], index: 3, kind: input, shape index: {}]
  %s4 = inlined_call_operand.hbm [shape: f32[64,128], index: 4, kind: output, shape index: {}]
  %s5 = sld [smem:[#allocation0]]
  $region53: #{tpu_custom_call.1} parent=0
    _
  %s7 = ssub.s32 1, %s5
  %s8 = scalar_select 0, %s7, %s5
  $region1: #{tpu_custom_call.1} parent=0
    #allocation2 [shape = 'u8[294912]{0}', space=vmem, size = 0x48000, scoped, tag = 'input window, operand 1, single buffered']
    #allocation3 [shape = 's32[2]{0}', space=sflag, size = 0x8, scoped, tag = 'scoped memory for tpu_custom_call.1']
    #allocation4 [shape = 's32[2]{0}', space=sflag, size = 0x8, scoped, tag = 'scoped memory for tpu_custom_call.1']
    #allocation5 [shape = 'u8[32768]{0}', space=vmem, size = 0x8000, scoped, tag = 'output window, operand 0']
    %9 = vsyncpa [#allocation3], 0
    %10 = vsyncpa [#allocation4], 0
    %s11 = scalar_lea.sflag [#allocation4], 1
    %12 = vsyncpa %s11, 0
    loop: start=0, step=1, limit=4
    $region2: #{tpu_custom_call.1} parent=1 // loop_pre_header
      _
    $region3: #{tpu_custom_call.1} parent=1 // loop_header
      %s14 = sphi 0, %s18
      %p15 = scmp.ge.s32.totalorder %s14, 4
      %s24 = sphi 0, %s26
      %s27 = sphi 0, %s24
      %s28 = sphi 0, %s27
      %s44 = sphi 0, %s28
      %s48 = sphi 0, %s48
      %s50 = sphi 0, %s48
      %s51 = sphi 0, %s50
      %s65 = sphi 0, %s51
      %s69 = sphi 0, %s69
      %s71 = sphi 0, %s69
      %s72 = sphi 0, %s71
      %s86 = sphi 0, %s72
      %s90 = sphi 0, %s90
      %s92 = sphi 0, %s90
      %s93 = sphi 0, %s92
      %s107 = sphi 0, %s93
      %s113 = sphi 0, %s115
      %s116 = sphi 0, %s113
      %s117 = sphi 0, %s116
      %s133 = sphi 0, %s117
    $region4: #{tpu_custom_call.1} parent=1 // loop_header_branch
      %17 = sbr.rel (%p15) target = $region8
    $region5: #{tpu_custom_call.1} parent=1 // loop_body
      %s19 = ssub.s32 %s14, 1
      %s20 = ssub.s32 %s14, 2
      %s21 = sadd.s32 %s14, 1
      %s22 = ssub.s32 %s14, %s21
      %p23 = scmp.eq.s32.totalorder %s22, 0
      %s25 = sadd.s32 %s24, 1
      %s26 = scalar_select %p23, %s24, %s25
      %p29 = pneg %p23
      %p30 = scmp.eq.s32.totalorder %s14, 1
      %p31 = por %p29, %p30
      %p32 = scmp.ne.s32.totalorder %s24, %s27
      %p33 = scmp.eq.s32.totalorder %s14, 0
      %p34 = por %p32, %p33
      %p35 = scmp.ne.s32.totalorder %s24, %s27
      %p36 = scmp.eq.s32.totalorder %s19, 1
      %p37 = por %p35, %p36
      %p38 = scmp.ne.s32.totalorder %s27, %s28
      %p39 = scmp.eq.s32.totalorder %s19, 0
      %p40 = por %p38, %p39
      %p41 = scmp.ne.s32.totalorder %s27, %s28
      %p42 = scmp.eq.s32.totalorder %s20, 1
      %p43 = por %p41, %p42
      %p45 = scmp.ne.s32.totalorder %s28, %s44
      %p46 = scmp.eq.s32.totalorder %s20, 0
      %p47 = por %p45, %p46
      %s49 = sadd.s32 %s48, 1
      %p52 = scmp.eq.s32.totalorder %s14, 1
      %p53 = scmp.ne.s32.totalorder %s48, %s50
      %p54 = scmp.eq.s32.totalorder %s14, 0
      %p55 = por %p53, %p54
      %p56 = scmp.ne.s32.totalorder %s48, %s50
      %p57 = scmp.eq.s32.totalorder %s19, 1
      %p58 = por %p56, %p57
      %p59 = scmp.ne.s32.totalorder %s50, %s51
      %p60 = scmp.eq.s32.totalorder %s19, 0
      %p61 = por %p59, %p60
      %p62 = scmp.ne.s32.totalorder %s50, %s51
      %p63 = scmp.eq.s32.totalorder %s20, 1
      %p64 = por %p62, %p63
      %p66 = scmp.ne.s32.totalorder %s51, %s65
      %p67 = scmp.eq.s32.totalorder %s20, 0
      %p68 = por %p66, %p67
      %s70 = sadd.s32 %s69, 1
      %p73 = scmp.eq.s32.totalorder %s14, 1
      %p74 = scmp.ne.s32.totalorder %s69, %s71
      %p75 = scmp.eq.s32.totalorder %s14, 0
      %p76 = por %p74, %p75
      %p77 = scmp.ne.s32.totalorder %s69, %s71
      %p78 = scmp.eq.s32.totalorder %s19, 1
      %p79 = por %p77, %p78
      %p80 = scmp.ne.s32.totalorder %s71, %s72
      %p81 = scmp.eq.s32.totalorder %s19, 0
      %p82 = por %p80, %p81
      %p83 = scmp.ne.s32.totalorder %s71, %s72
      %p84 = scmp.eq.s32.totalorder %s20, 1
      %p85 = por %p83, %p84
      %p87 = scmp.ne.s32.totalorder %s72, %s86
      %p88 = scmp.eq.s32.totalorder %s20, 0
      %p89 = por %p87, %p88
      %s91 = sadd.s32 %s90, 1
      %p94 = scmp.eq.s32.totalorder %s14, 1
      %p95 = scmp.ne.s32.totalorder %s90, %s92
      %p96 = scmp.eq.s32.totalorder %s14, 0
      %p97 = por %p95, %p96
      %p98 = scmp.ne.s32.totalorder %s90, %s92
      %p99 = scmp.eq.s32.totalorder %s19, 1
      %p100 = por %p98, %p99
      %p101 = scmp.ne.s32.totalorder %s92, %s93
      %p102 = scmp.eq.s32.totalorder %s19, 0
      %p103 = por %p101, %p102
      %p104 = scmp.ne.s32.totalorder %s92, %s93
      %p105 = scmp.eq.s32.totalorder %s20, 1
      %p106 = por %p104, %p105
      %p108 = scmp.ne.s32.totalorder %s93, %s107
      %p109 = scmp.eq.s32.totalorder %s20, 0
      %p110 = por %p108, %p109
      %s111 = ssub.s32 %s14, %s21
      %p112 = scmp.eq.s32.totalorder %s111, 0
      %s114 = sadd.s32 %s113, 1
      %s115 = scalar_select %p112, %s113, %s114
      %p118 = pneg %p112
      %p119 = scmp.eq.s32.totalorder %s14, 1
      %p120 = por %p118, %p119
      %p121 = scmp.ne.s32.totalorder %s113, %s116
      %p122 = scmp.eq.s32.totalorder %s14, 0
      %p123 = por %p121, %p122
      %p124 = scmp.ne.s32.totalorder %s113, %s116
      %p125 = scmp.eq.s32.totalorder %s19, 1
      %p126 = por %p124, %p125
      %p127 = scmp.ne.s32.totalorder %s116, %s117
      %p128 = scmp.eq.s32.totalorder %s19, 0
      %p129 = por %p127, %p128
      %p130 = scmp.ne.s32.totalorder %s116, %s117
      %p131 = scmp.eq.s32.totalorder %s20, 1
      %p132 = por %p130, %p131
      %p134 = scmp.ne.s32.totalorder %s117, %s133
      %p135 = scmp.eq.s32.totalorder %s20, 0
      %p136 = por %p134, %p135
      %p137 = scmp.le.s32.totalorder 1, %s14
      %p138 = scmp.lt.s32.totalorder %s14, 3
      %p139 = pnand %p137, %p138
      %p140 = pneg %p139
      // Predicated region
      $region9: #{tpu_custom_call.1} parent=5 // pred_check
        _
      $region10: #{tpu_custom_call.1} parent=5 // pred_check_branch
        %142 = sbr.rel (%p139) target = $region12
      $region11: #{tpu_custom_call.1} parent=5 // pred_region
        %s143 = ssub.s32 %s14, 1
        // Predicated region
        $region13: #{tpu_custom_call.1} parent=11 // pred_check
          %p144 = pneg %p61
        $region14: #{tpu_custom_call.1} parent=11 // pred_check_branch
          %146 = sbr.rel (%p144) target = $region16
        $region15: #{tpu_custom_call.1} parent=11 // pred_region
          %148 = vsyncadd [#allocation3], 0
          %s149 = sshll.u32 %s1, 4
          %s150 = int_to_ptr.hbm [resolvable:$true] %s149
          %s151 = sshll.u32 [#allocation2], 4
          %s152 = int_to_ptr.vmem [resolvable:$true] %s151
          %157 = dma.hbm_to_vmem [thread:$0]  %s150, 9216, %s152, [#allocation3], 576, 576, 36
        $region16: #{tpu_custom_call.1} parent=11 // pred_fallthru
          _
        // Predicated region
        $region17: #{tpu_custom_call.1} parent=11 // pred_check
          %p158 = pneg %p82
        $region18: #{tpu_custom_call.1} parent=11 // pred_check_branch
          %160 = sbr.rel (%p158) target = $region20
        $region19: #{tpu_custom_call.1} parent=11 // pred_region
          _
        $region20: #{tpu_custom_call.1} parent=11 // pred_fallthru
          _
        // Predicated region
        $region21: #{tpu_custom_call.1} parent=11 // pred_check
          %p161 = pneg %p103
        $region22: #{tpu_custom_call.1} parent=11 // pred_check_branch
          %163 = sbr.rel (%p161) target = $region24
        $region23: #{tpu_custom_call.1} parent=11 // pred_region
          _
        $region24: #{tpu_custom_call.1} parent=11 // pred_fallthru
          _
      $region12: #{tpu_custom_call.1} parent=5 // pred_fallthru
        _
      %p164 = scmp.lt.s32.totalorder %s14, 2
      // Predicated region
      $region25: #{tpu_custom_call.1} parent=5 // pred_check
        %p165 = pneg %p164
      $region26: #{tpu_custom_call.1} parent=5 // pred_check_branch
        %167 = sbr.rel (%p165) target = $region28
      $region27: #{tpu_custom_call.1} parent=5 // pred_region
        // Predicated region
        $region29: #{tpu_custom_call.1} parent=27 // pred_check
          %p168 = pneg %p34
        $region30: #{tpu_custom_call.1} parent=27 // pred_check_branch
          %170 = sbr.rel (%p168) target = $region32
        $region31: #{tpu_custom_call.1} parent=27 // pred_region
          %s171 = smul.u32 4, %s14
          %p172 = scmp.lt.s32.totalorder %s171, 7
          %s173 = scalar_select %p172, %s171, 7
          %s174 = smul.addr %s173, 8
          %s175 = scalar_lea.vmem %s0, %s174
          %s176 = smul.u32 4, %s14
        $region32: #{tpu_custom_call.1} parent=27 // pred_fallthru
          _
      $region28: #{tpu_custom_call.1} parent=5 // pred_fallthru
        _
      %p177 = scmp.le.s32.totalorder 1, %s14
      %p178 = scmp.lt.s32.totalorder %s14, 3
      %p179 = pnand %p177, %p178
      %p180 = pneg %p179
      // Predicated region
      $region33: #{tpu_custom_call.1} parent=5 // pred_check
        _
      $region34: #{tpu_custom_call.1} parent=5 // pred_check_branch
        %182 = sbr.rel (%p179) target = $region36
      $region35: #{tpu_custom_call.1} parent=5 // pred_region
        %s183 = ssub.s32 %s14, 1
        // Predicated region
        $region37: #{tpu_custom_call.1} parent=35 // pred_check
          %p184 = pneg %p61
        $region38: #{tpu_custom_call.1} parent=35 // pred_check_branch
          %186 = sbr.rel (%p184) target = $region40
        $region39: #{tpu_custom_call.1} parent=35 // pred_region
          %188 = dma.done [#allocation3], 9216
        $region40: #{tpu_custom_call.1} parent=35 // pred_fallthru
          _
        %s189 = smul.u32 4, %s19
        %p190 = scmp.lt.s32.totalorder %s189, 7
        %s191 = scalar_select %p190, %s189, 7
        %s192 = smul.addr %s191, 8
        %s193 = scalar_lea.vmem %s0, %s192
        %p194 = pneg %p40
        %p195 = pneg %p37
        %p196 = pneg %p61
        %p197 = pneg %p58
        %p198 = pneg %p82
        %p199 = pneg %p79
        %p200 = pneg %p103
        %p201 = pneg %p100
        %p202 = pneg %p129
        %p203 = pneg %p126
        %s204 = sand.u32 %s116, 1
        %s205 = scalar_lea.sflag [#allocation4], %s204
        %s206 = sand.u32 %s116, 1
        %s207 = smul.addr %s206, 32
        %s208 = scalar_lea.vmem [#allocation5], %s207
        %s209 = smul.u32 4, %s19
        %p210 = scmp.lt.s32.totalorder %s209, 7
        %s211 = scalar_select %p210, %s209, 7
        %s212 = smul.addr %s211, 8
        %s213 = scalar_lea.vmem %s0, %s212
        %s214 = smul.u32 4, %s19
        %s215 = smul.u32 4, %s19
        %v216 = vld [vmem:[%s213] sm:$0xff]
        %v217 = vld [vmem:[%s213 + $0x8] sm:$0xff]
        %v218 = vld [vmem:[%s213 + $0x10] sm:$0xff]
        %v219 = vld [vmem:[%s213 + $0x18] sm:$0xff]
        %v220 = vpack.c.bf16 %v217, %v216
        %v221 = vpack.c.bf16 %v219, %v218
        %v222 = vld [vmem:[#allocation2] sm:$0xf]
        %v223 = vld [vmem:[#allocation2 + $0x24] sm:$0xf]
        %v224 = vld [vmem:[#allocation2 + $0x48] sm:$0xf]
        %v225 = vld [vmem:[#allocation2 + $0x6c] sm:$0xf]
        %v226 = vld [vmem:[#allocation2 + $0x90] sm:$0xf]
        %v227 = vld [vmem:[#allocation2 + $0xb4] sm:$0xf]
        %v228 = vld [vmem:[#allocation2 + $0xd8] sm:$0xf]
        %v229 = vld [vmem:[#allocation2 + $0xfc] sm:$0xf]
        %v230 = vld [vmem:[#allocation2 + $0x120] sm:$0xf]
        %v231 = vld [vmem:[#allocation2 + $0x144] sm:$0xf]
        %v232 = vld [vmem:[#allocation2 + $0x168] sm:$0xf]
        %v233 = vld [vmem:[#allocation2 + $0x18c] sm:$0xf]
        %v234 = vld [vmem:[#allocation2 + $0x1b0] sm:$0xf]
        %v235 = vld [vmem:[#allocation2 + $0x1d4] sm:$0xf]
        %v236 = vld [vmem:[#allocation2 + $0x1f8] sm:$0xf]
        %v237 = vld [vmem:[#allocation2 + $0x21c] sm:$0xf]
        %v238 = vld [vmem:[%s2] sm:$0x1]
        %v240 = vperm.slane %v238, 0
        %v258 = vunpack.c.l.b16 %v222
        %v259 = vunpack.c.l.b16 %v223
        %v260 = vunpack.c.l.b16 %v224
        %v261 = vunpack.c.l.b16 %v225
        %v262 = vunpack.c.l.b16 %v226
        %v263 = vunpack.c.l.b16 %v227
        %v264 = vunpack.c.l.b16 %v228
        %v265 = vunpack.c.l.b16 %v229
        %v266 = vunpack.c.l.b16 %v230
        %v267 = vunpack.c.l.b16 %v231
        %v268 = vunpack.c.l.b16 %v232
        %v269 = vunpack.c.l.b16 %v233
        %v270 = vunpack.c.l.b16 %v234
        %v271 = vunpack.c.l.b16 %v235
        %v272 = vunpack.c.l.b16 %v236
        %v273 = vunpack.c.l.b16 %v237
        %v274 = vpack.c.b16 %v259, %v258
        %v275 = vpack.c.b16 %v261, %v260
        %v276 = vpack.c.b16 %v263, %v262
        %v277 = vpack.c.b16 %v265, %v264
        %v278 = vpack.c.b16 %v267, %v266
        %v279 = vpack.c.b16 %v269, %v268
        %v280 = vpack.c.b16 %v271, %v270
        %v281 = vpack.c.b16 %v273, %v272
        %290 = vmatpush.bf16.msra.mxu0 %v281
        %291 = vmatpush.bf16.msra.mxu0 %v280
        %292 = vmatpush.bf16.msra.mxu0 %v279
        %293 = vmatpush.bf16.msra.mxu0 %v278
        %294 = vmatpush.bf16.msra.mxu0 %v277
        %295 = vmatpush.bf16.msra.mxu0 %v276
        %296 = vmatpush.bf16.msra.mxu0 %v275
        %297 = vmatpush.bf16.msra.mxu0 %v274
        %298 = vmatmul.bf16.gmra.mxu0 %v220
        %v299 = vpop.f32.mrf.mxu0
        %v300 = vadd.f32 %v240, %v299
        %v301 = vpop.f32.mrf.mxu0
        %v302 = vadd.f32 %v240, %v301
        %303 = vmatmul.bf16.gmra.mxu0 %v221
        %v304 = vpop.f32.mrf.mxu0
        %v305 = vadd.f32 %v240, %v304
        %v306 = vpop.f32.mrf.mxu0
        %v307 = vadd.f32 %v240, %v306
        %308 = vdwg.mxu0
        %vm309 = vcmp.gt.f32.partialorder %v216, 0.0
        %vm310 = vcmp.gt.f32.partialorder %v217, 0.0
        %vm311 = vcmp.gt.f32.partialorder %v218, 0.0
        %vm312 = vcmp.gt.f32.partialorder %v219, 0.0
        %v313 = vmul.f32 %v216, 0.01
        %v314 = vmul.f32 %v217, 0.01
        %v315 = vmul.f32 %v218, 0.01
        %v316 = vmul.f32 %v219, 0.01
        %v317 = vsel %vm309, %v216, %v313
        %v318 = vsel %vm310, %v217, %v314
        %v319 = vsel %vm311, %v218, %v315
        %v320 = vsel %vm312, %v219, %v316
        %v321 = vpack.c.bf16 %v318, %v317
        %v322 = vpack.c.bf16 %v320, %v319
        %v323 = vld [vmem:[#allocation2 + $0x4] sm:$0xf]
        %v324 = vld [vmem:[#allocation2 + $0x28] sm:$0xf]
        %v325 = vld [vmem:[#allocation2 + $0x4c] sm:$0xf]
        %v326 = vld [vmem:[#allocation2 + $0x70] sm:$0xf]
        %v327 = vld [vmem:[#allocation2 + $0x94] sm:$0xf]
        %v328 = vld [vmem:[#allocation2 + $0xb8] sm:$0xf]
        %v329 = vld [vmem:[#allocation2 + $0xdc] sm:$0xf]
        %v330 = vld [vmem:[#allocation2 + $0x100] sm:$0xf]
        %v331 = vld [vmem:[#allocation2 + $0x124] sm:$0xf]
        %v332 = vld [vmem:[#allocation2 + $0x148] sm:$0xf]
        %v333 = vld [vmem:[#allocation2 + $0x16c] sm:$0xf]
        %v334 = vld [vmem:[#allocation2 + $0x190] sm:$0xf]
        %v335 = vld [vmem:[#allocation2 + $0x1b4] sm:$0xf]
        %v336 = vld [vmem:[#allocation2 + $0x1d8] sm:$0xf]
        %v337 = vld [vmem:[#allocation2 + $0x1fc] sm:$0xf]
        %v338 = vld [vmem:[#allocation2 + $0x220] sm:$0xf]
        %s339 = scalar_lea.vmem %s2, 1
        %v340 = vld [vmem:[%s339] sm:$0x1]
        %v342 = vperm.slane %v340, 0
        %v360 = vunpack.c.l.b16 %v323
        %v361 = vunpack.c.l.b16 %v324
        %v362 = vunpack.c.l.b16 %v325
        %v363 = vunpack.c.l.b16 %v326
        %v364 = vunpack.c.l.b16 %v327
        %v365 = vunpack.c.l.b16 %v328
        %v366 = vunpack.c.l.b16 %v329
        %v367 = vunpack.c.l.b16 %v330
        %v368 = vunpack.c.l.b16 %v331
        %v369 = vunpack.c.l.b16 %v332
        %v370 = vunpack.c.l.b16 %v333
        %v371 = vunpack.c.l.b16 %v334
        %v372 = vunpack.c.l.b16 %v335
        %v373 = vunpack.c.l.b16 %v336
        %v374 = vunpack.c.l.b16 %v337
        %v375 = vunpack.c.l.b16 %v338
        %v376 = vpack.c.b16 %v361, %v360
        %v377 = vpack.c.b16 %v363, %v362
        %v378 = vpack.c.b16 %v365, %v364
        %v379 = vpack.c.b16 %v367, %v366
        %v380 = vpack.c.b16 %v369, %v368
        %v381 = vpack.c.b16 %v371, %v370
        %v382 = vpack.c.b16 %v373, %v372
        %v383 = vpack.c.b16 %v375, %v374
        %392 = vmatpush.bf16.msra.mxu0 %v383
        %393 = vmatpush.bf16.msra.mxu0 %v382
        %394 = vmatpush.bf16.msra.mxu0 %v381
        %395 = vmatpush.bf16.msra.mxu0 %v380
        %396 = vmatpush.bf16.msra.mxu0 %v379
        %397 = vmatpush.bf16.msra.mxu0 %v378
        %398 = vmatpush.bf16.msra.mxu0 %v377
        %399 = vmatpush.bf16.msra.mxu0 %v376
        %400 = vmatmul.bf16.gmra.mxu0 %v321
        %v401 = vpop.f32.mrf.mxu0
        %v402 = vadd.f32 %v342, %v401
        %v403 = vpop.f32.mrf.mxu0
        %v404 = vadd.f32 %v342, %v403
        %405 = vmatmul.bf16.gmra.mxu0 %v322
        %v406 = vpop.f32.mrf.mxu0
        %v407 = vadd.f32 %v342, %v406
        %v408 = vpop.f32.mrf.mxu0
        %v409 = vadd.f32 %v342, %v408
        %410 = vdwg.mxu0
        %v411 = vpack.c.bf16 %v404, %v402
        %v412 = vpack.c.bf16 %v409, %v407
        %v413 = vld [vmem:[#allocation2 + $0x8] sm:$0xff]
        %v414 = vld [vmem:[#allocation2 + $0x10] sm:$0xf]
        %v415 = vld [vmem:[#allocation2 + $0x2c] sm:$0xff]
        %v416 = vld [vmem:[#allocation2 + $0x34] sm:$0xf]
        %v417 = vld [vmem:[#allocation2 + $0x50] sm:$0xff]
        %v418 = vld [vmem:[#allocation2 + $0x58] sm:$0xf]
        %v419 = vld [vmem:[#allocation2 + $0x74] sm:$0xff]
        %v420 = vld [vmem:[#allocation2 + $0x7c] sm:$0xf]
        %v421 = vld [vmem:[#allocation2 + $0x98] sm:$0xff]
        %v422 = vld [vmem:[#allocation2 + $0xa0] sm:$0xf]
        %v423 = vld [vmem:[#allocation2 + $0xbc] sm:$0xff]
        %v424 = vld [vmem:[#allocation2 + $0xc4] sm:$0xf]
        %v425 = vld [vmem:[#allocation2 + $0xe0] sm:$0xff]
        %v426 = vld [vmem:[#allocation2 + $0xe8] sm:$0xf]
        %v427 = vld [vmem:[#allocation2 + $0x104] sm:$0xff]
        %v428 = vld [vmem:[#allocation2 + $0x10c] sm:$0xf]
        %v429 = vld [vmem:[#allocation2 + $0x128] sm:$0xff]
        %v430 = vld [vmem:[#allocation2 + $0x130] sm:$0xf]
        %v431 = vld [vmem:[#allocation2 + $0x14c] sm:$0xff]
        %v432 = vld [vmem:[#allocation2 + $0x154] sm:$0xf]
        %v433 = vld [vmem:[#allocation2 + $0x170] sm:$0xff]
        %v434 = vld [vmem:[#allocation2 + $0x178] sm:$0xf]
        %v435 = vld [vmem:[#allocation2 + $0x194] sm:$0xff]
        %v436 = vld [vmem:[#allocation2 + $0x19c] sm:$0xf]
        %v437 = vld [vmem:[#allocation2 + $0x1b8] sm:$0xff]
        %v438 = vld [vmem:[#allocation2 + $0x1c0] sm:$0xf]
        %v439 = vld [vmem:[#allocation2 + $0x1dc] sm:$0xff]
        %v440 = vld [vmem:[#allocation2 + $0x1e4] sm:$0xf]
        %v441 = vld [vmem:[#allocation2 + $0x200] sm:$0xff]
        %v442 = vld [vmem:[#allocation2 + $0x208] sm:$0xf]
        %v443 = vld [vmem:[#allocation2 + $0x224] sm:$0xff]
        %v444 = vld [vmem:[#allocation2 + $0x22c] sm:$0xf]
        %v477 = vunpack.c.l.b16 %v413
        %v478 = vunpack.c.h.b16 %v413
        %v479 = vunpack.c.l.b16 %v414
        %v480 = vunpack.c.l.b16 %v415
        %v481 = vunpack.c.h.b16 %v415
        %v482 = vunpack.c.l.b16 %v416
        %v483 = vunpack.c.l.b16 %v417
        %v484 = vunpack.c.h.b16 %v417
        %v485 = vunpack.c.l.b16 %v418
        %v486 = vunpack.c.l.b16 %v419
        %v487 = vunpack.c.h.b16 %v419
        %v488 = vunpack.c.l.b16 %v420
        %v489 = vunpack.c.l.b16 %v421
        %v490 = vunpack.c.h.b16 %v421
        %v491 = vunpack.c.l.b16 %v422
        %v492 = vunpack.c.l.b16 %v423
        %v493 = vunpack.c.h.b16 %v423
        %v494 = vunpack.c.l.b16 %v424
        %v495 = vunpack.c.l.b16 %v425
        %v496 = vunpack.c.h.b16 %v425
        %v497 = vunpack.c.l.b16 %v426
        %v498 = vunpack.c.l.b16 %v427
        %v499 = vunpack.c.h.b16 %v427
        %v500 = vunpack.c.l.b16 %v428
        %v501 = vunpack.c.l.b16 %v429
        %v502 = vunpack.c.h.b16 %v429
        %v503 = vunpack.c.l.b16 %v430
        %v504 = vunpack.c.l.b16 %v431
        %v505 = vunpack.c.h.b16 %v431
        %v506 = vunpack.c.l.b16 %v432
        %v507 = vunpack.c.l.b16 %v433
        %v508 = vunpack.c.h.b16 %v433
        %v509 = vunpack.c.l.b16 %v434
        %v510 = vunpack.c.l.b16 %v435
        %v511 = vunpack.c.h.b16 %v435
        %v512 = vunpack.c.l.b16 %v436
        %v513 = vunpack.c.l.b16 %v437
        %v514 = vunpack.c.h.b16 %v437
        %v515 = vunpack.c.l.b16 %v438
        %v516 = vunpack.c.l.b16 %v439
        %v517 = vunpack.c.h.b16 %v439
        %v518 = vunpack.c.l.b16 %v440
        %v519 = vunpack.c.l.b16 %v441
        %v520 = vunpack.c.h.b16 %v441
        %v521 = vunpack.c.l.b16 %v442
        %v522 = vunpack.c.l.b16 %v443
        %v523 = vunpack.c.h.b16 %v443
        %v524 = vunpack.c.l.b16 %v444
        %v525 = vpack.c.b16 %v480, %v477
        %v526 = vpack.c.b16 %v481, %v478
        %v527 = vpack.c.b16 %v482, %v479
        %v528 = vpack.c.b16 %v486, %v483
        %v529 = vpack.c.b16 %v487, %v484
        %v530 = vpack.c.b16 %v488, %v485
        %v531 = vpack.c.b16 %v492, %v489
        %v532 = vpack.c.b16 %v493, %v490
        %v533 = vpack.c.b16 %v494, %v491
        %v534 = vpack.c.b16 %v498, %v495
        %v535 = vpack.c.b16 %v499, %v496
        %v536 = vpack.c.b16 %v500, %v497
        %v537 = vpack.c.b16 %v504, %v501
        %v538 = vpack.c.b16 %v505, %v502
        %v539 = vpack.c.b16 %v506, %v503
        %v540 = vpack.c.b16 %v510, %v507
        %v541 = vpack.c.b16 %v511, %v508
        %v542 = vpack.c.b16 %v512, %v509
        %v543 = vpack.c.b16 %v516, %v513
        %v544 = vpack.c.b16 %v517, %v514
        %v545 = vpack.c.b16 %v518, %v515
        %v546 = vpack.c.b16 %v522, %v519
        %v547 = vpack.c.b16 %v523, %v520
        %v548 = vpack.c.b16 %v524, %v521
        %573 = vmatpush.bf16.msra.mxu0 %v546
        %574 = vmatpush.bf16.msra.mxu0 %v543
        %575 = vmatpush.bf16.msra.mxu0 %v540
        %576 = vmatpush.bf16.msra.mxu0 %v537
        %577 = vmatpush.bf16.msra.mxu0 %v534
        %578 = vmatpush.bf16.msra.mxu0 %v531
        %579 = vmatpush.bf16.msra.mxu0 %v528
        %580 = vmatpush.bf16.msra.mxu0 %v525
        %581 = vmatmul.bf16.gmra.mxu0 %v411
        %v582 = vpop.f32.mrf.mxu0
        %v583 = vadd.f32 0.0, %v582
        %v584 = vpop.f32.mrf.mxu0
        %v585 = vadd.f32 0.0, %v584
        %586 = vmatmul.bf16.gmra.mxu0 %v412
        %v587 = vpop.f32.mrf.mxu0
        %v588 = vadd.f32 0.0, %v587
        %v589 = vpop.f32.mrf.mxu0
        %v590 = vadd.f32 0.0, %v589
        %591 = vdwg.mxu0
        %592 = vmatpush.bf16.msra.mxu0 %v547
        %593 = vmatpush.bf16.msra.mxu0 %v544
        %594 = vmatpush.bf16.msra.mxu0 %v541
        %595 = vmatpush.bf16.msra.mxu0 %v538
        %596 = vmatpush.bf16.msra.mxu0 %v535
        %597 = vmatpush.bf16.msra.mxu0 %v532
        %598 = vmatpush.bf16.msra.mxu0 %v529
        %599 = vmatpush.bf16.msra.mxu0 %v526
        %600 = vmatmul.bf16.gmra.mxu0 %v411
        %v601 = vpop.f32.mrf.mxu0
        %v602 = vadd.f32 0.0, %v601
        %v603 = vpop.f32.mrf.mxu0
        %v604 = vadd.f32 0.0, %v603
        %605 = vmatmul.bf16.gmra.mxu0 %v412
        %v606 = vpop.f32.mrf.mxu0
        %v607 = vadd.f32 0.0, %v606
        %v608 = vpop.f32.mrf.mxu0
        %v609 = vadd.f32 0.0, %v608
        %610 = vdwg.mxu0
        %611 = vmatpush.bf16.msra.mxu0 %v548
        %612 = vmatpush.bf16.msra.mxu0 %v545
        %613 = vmatpush.bf16.msra.mxu0 %v542
        %614 = vmatpush.bf16.msra.mxu0 %v539
        %615 = vmatpush.bf16.msra.mxu0 %v536
        %616 = vmatpush.bf16.msra.mxu0 %v533
        %617 = vmatpush.bf16.msra.mxu0 %v530
        %618 = vmatpush.bf16.msra.mxu0 %v527
        %619 = vmatmul.bf16.gmra.mxu0 %v411
        %v620 = vpop.f32.mrf.mxu0
        %v621 = vadd.f32 0.0, %v620
        %v622 = vpop.f32.mrf.mxu0
        %v623 = vadd.f32 0.0, %v622
        %624 = vmatmul.bf16.gmra.mxu0 %v412
        %v625 = vpop.f32.mrf.mxu0
        %v626 = vadd.f32 0.0, %v625
        %v627 = vpop.f32.mrf.mxu0
        %v628 = vadd.f32 0.0, %v627
        %629 = vdwg.mxu0
        %v630 = vrot.slane %v583, 7
        %v631 = vrot.slane %v585, 7
        %v632 = vrot.slane %v588, 7
        %v633 = vrot.slane %v590, 7
        %v634 = vlaneseq
        %v635 = vshrl.u32 %v634, 7
        %vm636 = vcmp.lt.s32.totalorder %v635, 1
        %v637 = vsel %vm636, %v632, %v633
        %v638 = vsel %vm636, %v631, %v632
        %v639 = vsel %vm636, %v630, %v631
        %v640 = vsel %vm636, %v633, %v630
        %v641 = vld [vmem:[%s3] sm:$0xff]
        %v642 = vld [vmem:[%s3 + $0x8] sm:$0xff]
        %v643 = vld [vmem:[%s3 + $0x10] sm:$0xff]
        %v644 = vld [vmem:[%s3 + $0x18] sm:$0xff]
        %646 = vset.pattern.permute.xlu0 0
        %647 = vperm.xlu0 %646, %v641
        %v648 = vpop.permute.xlu0 %647
        %651 = vset.pattern.permute.xlu0 0
        %652 = vperm.xlu0 %651, %v642
        %v653 = vpop.permute.xlu0 %652
        %656 = vset.pattern.permute.xlu0 0
        %657 = vperm.xlu0 %656, %v643
        %v658 = vpop.permute.xlu0 %657
        %661 = vset.pattern.permute.xlu0 0
        %662 = vperm.xlu0 %661, %v644
        %v663 = vpop.permute.xlu0 %662
        %v665 = vmul.f32 %v640, %v648
        %v666 = vmul.f32 %v639, %v653
        %v667 = vmul.f32 %v638, %v658
        %v668 = vmul.f32 %v637, %v663
        %v669 = vadd.f32 %v665, %v602
        %v670 = vadd.f32 %v666, %v604
        %v671 = vadd.f32 %v667, %v607
        %v672 = vadd.f32 %v668, %v609
        %v673 = vrot.slane %v621, 1
        %v674 = vrot.slane %v623, 1
        %v675 = vrot.slane %v626, 1
        %v676 = vrot.slane %v628, 1
        %vm677 = vcmp.lt.s32.totalorder %v635, 7
        %v678 = vsel %vm677, %v675, %v676
        %v679 = vsel %vm677, %v674, %v675
        %v680 = vsel %vm677, %v673, %v674
        %v681 = vsel %vm677, %v676, %v673
        %s682 = scalar_lea.vmem %s3, 64
        %v683 = vld [vmem:[%s682] sm:$0xff]
        %v684 = vld [vmem:[%s682 + $0x8] sm:$0xff]
        %v685 = vld [vmem:[%s682 + $0x10] sm:$0xff]
        %v686 = vld [vmem:[%s682 + $0x18] sm:$0xff]
        %688 = vset.pattern.permute.xlu0 0
        %689 = vperm.xlu0 %688, %v683
        %v690 = vpop.permute.xlu0 %689
        %693 = vset.pattern.permute.xlu0 0
        %694 = vperm.xlu0 %693, %v684
        %v695 = vpop.permute.xlu0 %694
        %698 = vset.pattern.permute.xlu0 0
        %699 = vperm.xlu0 %698, %v685
        %v700 = vpop.permute.xlu0 %699
        %703 = vset.pattern.permute.xlu0 0
        %704 = vperm.xlu0 %703, %v686
        %v705 = vpop.permute.xlu0 %704
        %v707 = vmul.f32 %v680, %v690
        %v708 = vmul.f32 %v679, %v695
        %v709 = vmul.f32 %v678, %v700
        %v710 = vmul.f32 %v681, %v705
        %v711 = vadd.f32 %v669, %v707
        %v712 = vadd.f32 %v670, %v708
        %v713 = vadd.f32 %v671, %v709
        %v714 = vadd.f32 %v672, %v710
        %s715 = scalar_lea.vmem %s2, 2
        %v716 = vld [vmem:[%s715] sm:$0x1]
        %v718 = vperm.slane %v716, 0
        %v720 = vadd.f32 %v711, %v718
        %v721 = vadd.f32 %v712, %v718
        %v722 = vadd.f32 %v713, %v718
        %v723 = vadd.f32 %v714, %v718
        %vm724 = vcmp.gt.f32.partialorder %v720, 0.0
        %vm725 = vcmp.gt.f32.partialorder %v721, 0.0
        %vm726 = vcmp.gt.f32.partialorder %v722, 0.0
        %vm727 = vcmp.gt.f32.partialorder %v723, 0.0
        %v728 = vmul.f32 %v720, 0.01
        %v729 = vmul.f32 %v721, 0.01
        %v730 = vmul.f32 %v722, 0.01
        %v731 = vmul.f32 %v723, 0.01
        %v732 = vsel %vm724, %v720, %v728
        %v733 = vsel %vm725, %v721, %v729
        %v734 = vsel %vm726, %v722, %v730
        %v735 = vsel %vm727, %v723, %v731
        %v736 = vpack.c.bf16 %v733, %v732
        %v737 = vpack.c.bf16 %v735, %v734
        %v738 = vld [vmem:[#allocation2 + $0x14] sm:$0xf]
        %v739 = vld [vmem:[#allocation2 + $0x38] sm:$0xf]
        %v740 = vld [vmem:[#allocation2 + $0x5c] sm:$0xf]
        %v741 = vld [vmem:[#allocation2 + $0x80] sm:$0xf]
        %v742 = vld [vmem:[#allocation2 + $0xa4] sm:$0xf]
        %v743 = vld [vmem:[#allocation2 + $0xc8] sm:$0xf]
        %v744 = vld [vmem:[#allocation2 + $0xec] sm:$0xf]
        %v745 = vld [vmem:[#allocation2 + $0x110] sm:$0xf]
        %v746 = vld [vmem:[#allocation2 + $0x134] sm:$0xf]
        %v747 = vld [vmem:[#allocation2 + $0x158] sm:$0xf]
        %v748 = vld [vmem:[#allocation2 + $0x17c] sm:$0xf]
        %v749 = vld [vmem:[#allocation2 + $0x1a0] sm:$0xf]
        %v750 = vld [vmem:[#allocation2 + $0x1c4] sm:$0xf]
        %v751 = vld [vmem:[#allocation2 + $0x1e8] sm:$0xf]
        %v752 = vld [vmem:[#allocation2 + $0x20c] sm:$0xf]
        %v753 = vld [vmem:[#allocation2 + $0x230] sm:$0xf]
        %s754 = scalar_lea.vmem %s2, 3
        %v755 = vld [vmem:[%s754] sm:$0x1]
        %v757 = vperm.slane %v755, 0
        %v775 = vunpack.c.l.b16 %v738
        %v776 = vunpack.c.l.b16 %v739
        %v777 = vunpack.c.l.b16 %v740
        %v778 = vunpack.c.l.b16 %v741
        %v779 = vunpack.c.l.b16 %v742
        %v780 = vunpack.c.l.b16 %v743
        %v781 = vunpack.c.l.b16 %v744
        %v782 = vunpack.c.l.b16 %v745
        %v783 = vunpack.c.l.b16 %v746
        %v784 = vunpack.c.l.b16 %v747
        %v785 = vunpack.c.l.b16 %v748
        %v786 = vunpack.c.l.b16 %v749
        %v787 = vunpack.c.l.b16 %v750
        %v788 = vunpack.c.l.b16 %v751
        %v789 = vunpack.c.l.b16 %v752
        %v790 = vunpack.c.l.b16 %v753
        %v791 = vpack.c.b16 %v776, %v775
        %v792 = vpack.c.b16 %v778, %v777
        %v793 = vpack.c.b16 %v780, %v779
        %v794 = vpack.c.b16 %v782, %v781
        %v795 = vpack.c.b16 %v784, %v783
        %v796 = vpack.c.b16 %v786, %v785
        %v797 = vpack.c.b16 %v788, %v787
        %v798 = vpack.c.b16 %v790, %v789
        %807 = vmatpush.bf16.msra.mxu0 %v798
        %808 = vmatpush.bf16.msra.mxu0 %v797
        %809 = vmatpush.bf16.msra.mxu0 %v796
        %810 = vmatpush.bf16.msra.mxu0 %v795
        %811 = vmatpush.bf16.msra.mxu0 %v794
        %812 = vmatpush.bf16.msra.mxu0 %v793
        %813 = vmatpush.bf16.msra.mxu0 %v792
        %814 = vmatpush.bf16.msra.mxu0 %v791
        %815 = vmatmul.bf16.gmra.mxu0 %v736
        %v816 = vpop.f32.mrf.mxu0
        %v817 = vadd.f32 %v757, %v816
        %v818 = vpop.f32.mrf.mxu0
        %v819 = vadd.f32 %v757, %v818
        %820 = vmatmul.bf16.gmra.mxu0 %v737
        %v821 = vpop.f32.mrf.mxu0
        %v822 = vadd.f32 %v757, %v821
        %v823 = vpop.f32.mrf.mxu0
        %v824 = vadd.f32 %v757, %v823
        %825 = vdwg.mxu0
        %v826 = vpack.c.bf16 %v819, %v817
        %v827 = vpack.c.bf16 %v824, %v822
        %v828 = vld [vmem:[#allocation2 + $0x18] sm:$0xff]
        %v829 = vld [vmem:[#allocation2 + $0x20] sm:$0xf]
        %v830 = vld [vmem:[#allocation2 + $0x3c] sm:$0xff]
        %v831 = vld [vmem:[#allocation2 + $0x44] sm:$0xf]
        %v832 = vld [vmem:[#allocation2 + $0x60] sm:$0xff]
        %v833 = vld [vmem:[#allocation2 + $0x68] sm:$0xf]
        %v834 = vld [vmem:[#allocation2 + $0x84] sm:$0xff]
        %v835 = vld [vmem:[#allocation2 + $0x8c] sm:$0xf]
        %v836 = vld [vmem:[#allocation2 + $0xa8] sm:$0xff]
        %v837 = vld [vmem:[#allocation2 + $0xb0] sm:$0xf]
        %v838 = vld [vmem:[#allocation2 + $0xcc] sm:$0xff]
        %v839 = vld [vmem:[#allocation2 + $0xd4] sm:$0xf]
        %v840 = vld [vmem:[#allocation2 + $0xf0] sm:$0xff]
        %v841 = vld [vmem:[#allocation2 + $0xf8] sm:$0xf]
        %v842 = vld [vmem:[#allocation2 + $0x114] sm:$0xff]
        %v843 = vld [vmem:[#allocation2 + $0x11c] sm:$0xf]
        %v844 = vld [vmem:[#allocation2 + $0x138] sm:$0xff]
        %v845 = vld [vmem:[#allocation2 + $0x140] sm:$0xf]
        %v846 = vld [vmem:[#allocation2 + $0x15c] sm:$0xff]
        %v847 = vld [vmem:[#allocation2 + $0x164] sm:$0xf]
        %v848 = vld [vmem:[#allocation2 + $0x180] sm:$0xff]
        %v849 = vld [vmem:[#allocation2 + $0x188] sm:$0xf]
        %v850 = vld [vmem:[#allocation2 + $0x1a4] sm:$0xff]
        %v851 = vld [vmem:[#allocation2 + $0x1ac] sm:$0xf]
        %v852 = vld [vmem:[#allocation2 + $0x1c8] sm:$0xff]
        %v853 = vld [vmem:[#allocation2 + $0x1d0] sm:$0xf]
        %v854 = vld [vmem:[#allocation2 + $0x1ec] sm:$0xff]
        %v855 = vld [vmem:[#allocation2 + $0x1f4] sm:$0xf]
        %v856 = vld [vmem:[#allocation2 + $0x210] sm:$0xff]
        %v857 = vld [vmem:[#allocation2 + $0x218] sm:$0xf]
        %v858 = vld [vmem:[#allocation2 + $0x234] sm:$0xff]
        %v859 = vld [vmem:[#allocation2 + $0x23c] sm:$0xf]
        %v892 = vunpack.c.l.b16 %v828
        %v893 = vunpack.c.h.b16 %v828
        %v894 = vunpack.c.l.b16 %v829
        %v895 = vunpack.c.l.b16 %v830
        %v896 = vunpack.c.h.b16 %v830
        %v897 = vunpack.c.l.b16 %v831
        %v898 = vunpack.c.l.b16 %v832
        %v899 = vunpack.c.h.b16 %v832
        %v900 = vunpack.c.l.b16 %v833
        %v901 = vunpack.c.l.b16 %v834
        %v902 = vunpack.c.h.b16 %v834
        %v903 = vunpack.c.l.b16 %v835
        %v904 = vunpack.c.l.b16 %v836
        %v905 = vunpack.c.h.b16 %v836
        %v906 = vunpack.c.l.b16 %v837
        %v907 = vunpack.c.l.b16 %v838
        %v908 = vunpack.c.h.b16 %v838
        %v909 = vunpack.c.l.b16 %v839
        %v910 = vunpack.c.l.b16 %v840
        %v911 = vunpack.c.h.b16 %v840
        %v912 = vunpack.c.l.b16 %v841
        %v913 = vunpack.c.l.b16 %v842
        %v914 = vunpack.c.h.b16 %v842
        %v915 = vunpack.c.l.b16 %v843
        %v916 = vunpack.c.l.b16 %v844
        %v917 = vunpack.c.h.b16 %v844
        %v918 = vunpack.c.l.b16 %v845
        %v919 = vunpack.c.l.b16 %v846
        %v920 = vunpack.c.h.b16 %v846
        %v921 = vunpack.c.l.b16 %v847
        %v922 = vunpack.c.l.b16 %v848
        %v923 = vunpack.c.h.b16 %v848
        %v924 = vunpack.c.l.b16 %v849
        %v925 = vunpack.c.l.b16 %v850
        %v926 = vunpack.c.h.b16 %v850
        %v927 = vunpack.c.l.b16 %v851
        %v928 = vunpack.c.l.b16 %v852
        %v929 = vunpack.c.h.b16 %v852
        %v930 = vunpack.c.l.b16 %v853
        %v931 = vunpack.c.l.b16 %v854
        %v932 = vunpack.c.h.b16 %v854
        %v933 = vunpack.c.l.b16 %v855
        %v934 = vunpack.c.l.b16 %v856
        %v935 = vunpack.c.h.b16 %v856
        %v936 = vunpack.c.l.b16 %v857
        %v937 = vunpack.c.l.b16 %v858
        %v938 = vunpack.c.h.b16 %v858
        %v939 = vunpack.c.l.b16 %v859
        %v940 = vpack.c.b16 %v895, %v892
        %v941 = vpack.c.b16 %v896, %v893
        %v942 = vpack.c.b16 %v897, %v894
        %v943 = vpack.c.b16 %v901, %v898
        %v944 = vpack.c.b16 %v902, %v899
        %v945 = vpack.c.b16 %v903, %v900
        %v946 = vpack.c.b16 %v907, %v904
        %v947 = vpack.c.b16 %v908, %v905
        %v948 = vpack.c.b16 %v909, %v906
        %v949 = vpack.c.b16 %v913, %v910
        %v950 = vpack.c.b16 %v914, %v911
        %v951 = vpack.c.b16 %v915, %v912
        %v952 = vpack.c.b16 %v919, %v916
        %v953 = vpack.c.b16 %v920, %v917
        %v954 = vpack.c.b16 %v921, %v918
        %v955 = vpack.c.b16 %v925, %v922
        %v956 = vpack.c.b16 %v926, %v923
        %v957 = vpack.c.b16 %v927, %v924
        %v958 = vpack.c.b16 %v931, %v928
        %v959 = vpack.c.b16 %v932, %v929
        %v960 = vpack.c.b16 %v933, %v930
        %v961 = vpack.c.b16 %v937, %v934
        %v962 = vpack.c.b16 %v938, %v935
        %v963 = vpack.c.b16 %v939, %v936
        %988 = vmatpush.bf16.msra.mxu0 %v961
        %989 = vmatpush.bf16.msra.mxu0 %v958
        %990 = vmatpush.bf16.msra.mxu0 %v955
        %991 = vmatpush.bf16.msra.mxu0 %v952
        %992 = vmatpush.bf16.msra.mxu0 %v949
        %993 = vmatpush.bf16.msra.mxu0 %v946
        %994 = vmatpush.bf16.msra.mxu0 %v943
        %995 = vmatpush.bf16.msra.mxu0 %v940
        %996 = vmatmul.bf16.gmra.mxu0 %v826
        %v997 = vpop.f32.mrf.mxu0
        %v998 = vadd.f32 0.0, %v997
        %v999 = vpop.f32.mrf.mxu0
        %v1000 = vadd.f32 0.0, %v999
        %1001 = vmatmul.bf16.gmra.mxu0 %v827
        %v1002 = vpop.f32.mrf.mxu0
        %v1003 = vadd.f32 0.0, %v1002
        %v1004 = vpop.f32.mrf.mxu0
        %v1005 = vadd.f32 0.0, %v1004
        %1006 = vdwg.mxu0
        %1007 = vmatpush.bf16.msra.mxu0 %v962
        %1008 = vmatpush.bf16.msra.mxu0 %v959
        %1009 = vmatpush.bf16.msra.mxu0 %v956
        %1010 = vmatpush.bf16.msra.mxu0 %v953
        %1011 = vmatpush.bf16.msra.mxu0 %v950
        %1012 = vmatpush.bf16.msra.mxu0 %v947
        %1013 = vmatpush.bf16.msra.mxu0 %v944
        %1014 = vmatpush.bf16.msra.mxu0 %v941
        %1015 = vmatmul.bf16.gmra.mxu0 %v826
        %v1016 = vpop.f32.mrf.mxu0
        %v1017 = vadd.f32 0.0, %v1016
        %v1018 = vpop.f32.mrf.mxu0
        %v1019 = vadd.f32 0.0, %v1018
        %1020 = vmatmul.bf16.gmra.mxu0 %v827
        %v1021 = vpop.f32.mrf.mxu0
        %v1022 = vadd.f32 0.0, %v1021
        %v1023 = vpop.f32.mrf.mxu0
        %v1024 = vadd.f32 0.0, %v1023
        %1025 = vdwg.mxu0
        %1026 = vmatpush.bf16.msra.mxu0 %v963
        %1027 = vmatpush.bf16.msra.mxu0 %v960
        %1028 = vmatpush.bf16.msra.mxu0 %v957
        %1029 = vmatpush.bf16.msra.mxu0 %v954
        %1030 = vmatpush.bf16.msra.mxu0 %v951
        %1031 = vmatpush.bf16.msra.mxu0 %v948
        %1032 = vmatpush.bf16.msra.mxu0 %v945
        %1033 = vmatpush.bf16.msra.mxu0 %v942
        %1034 = vmatmul.bf16.gmra.mxu0 %v826
        %v1035 = vpop.f32.mrf.mxu0
        %v1036 = vadd.f32 0.0, %v1035
        %v1037 = vpop.f32.mrf.mxu0
        %v1038 = vadd.f32 0.0, %v1037
        %1039 = vmatmul.bf16.gmra.mxu0 %v827
        %v1040 = vpop.f32.mrf.mxu0
        %v1041 = vadd.f32 0.0, %v1040
        %v1042 = vpop.f32.mrf.mxu0
        %v1043 = vadd.f32 0.0, %v1042
        %1044 = vdwg.mxu0
        %v1045 = vrot.slane %v998, 7
        %v1046 = vrot.slane %v1000, 7
        %v1047 = vrot.slane %v1003, 7
        %v1048 = vrot.slane %v1005, 7
        %v1049 = vsel %vm636, %v1047, %v1048
        %v1050 = vsel %vm636, %v1046, %v1047
        %v1051 = vsel %vm636, %v1045, %v1046
        %v1052 = vsel %vm636, %v1048, %v1045
        %v1053 = vmul.f32 %v1052, %v648
        %v1054 = vmul.f32 %v1051, %v653
        %v1055 = vmul.f32 %v1050, %v658
        %v1056 = vmul.f32 %v1049, %v663
        %v1057 = vadd.f32 %v1053, %v1017
        %v1058 = vadd.f32 %v1054, %v1019
        %v1059 = vadd.f32 %v1055, %v1022
        %v1060 = vadd.f32 %v1056, %v1024
        %v1061 = vrot.slane %v1036, 1
        %v1062 = vrot.slane %v1038, 1
        %v1063 = vrot.slane %v1041, 1
        %v1064 = vrot.slane %v1043, 1
        %v1065 = vsel %vm677, %v1063, %v1064
        %v1066 = vsel %vm677, %v1062, %v1063
        %v1067 = vsel %vm677, %v1061, %v1062
        %v1068 = vsel %vm677, %v1064, %v1061
        %v1069 = vmul.f32 %v1067, %v690
        %v1070 = vmul.f32 %v1066, %v695
        %v1071 = vmul.f32 %v1065, %v700
        %v1072 = vmul.f32 %v1068, %v705
        %v1073 = vadd.f32 %v1057, %v1069
        %v1074 = vadd.f32 %v1058, %v1070
        %v1075 = vadd.f32 %v1059, %v1071
        %v1076 = vadd.f32 %v1060, %v1072
        %s1077 = scalar_lea.vmem %s2, 4
        %v1078 = vld [vmem:[%s1077] sm:$0x1]
        %v1080 = vperm.slane %v1078, 0
        %v1082 = vadd.f32 %v1073, %v1080
        %v1083 = vadd.f32 %v1074, %v1080
        %v1084 = vadd.f32 %v1075, %v1080
        %v1085 = vadd.f32 %v1076, %v1080
        %v1086 = vmul.f32 %v1082, 0.1
        %v1087 = vmul.f32 %v1083, 0.1
        %v1088 = vmul.f32 %v1084, 0.1
        %v1089 = vmul.f32 %v1085, 0.1
        %v1090 = vadd.f32 %v300, %v1086
        %v1091 = vadd.f32 %v302, %v1087
        %v1092 = vadd.f32 %v305, %v1088
        %v1093 = vadd.f32 %v307, %v1089
        %1094 = vst [vmem:[%s208] sm:$0xff] %v1090
        %1095 = vst [vmem:[%s208 + $0x8] sm:$0xff] %v1091
        %1096 = vst [vmem:[%s208 + $0x10] sm:$0xff] %v1092
        %1097 = vst [vmem:[%s208 + $0x18] sm:$0xff] %v1093
        %s1098 = sand.u32 %s116, 1
        %s1099 = scalar_lea.sflag [#allocation4], %s1098
        %s1100 = sand.u32 %s116, 1
        %s1101 = smul.addr %s1100, 32
        %s1102 = scalar_lea.vmem [#allocation5], %s1101
        // Predicated region
        $region41: #{tpu_custom_call.1} parent=35 // pred_check
          %p1103 = pneg %p126
        $region42: #{tpu_custom_call.1} parent=35 // pred_check_branch
          %1105 = sbr.rel (%p1103) target = $region44
        $region43: #{tpu_custom_call.1} parent=35 // pred_region
          %s1106 = smul.u32 4, %s19
          %1108 = vsyncadd %s1099, 0
          %s1109 = smul.addr %s1106, 8
          %s1110 = scalar_lea.hbm %s4, %s1109
          %s1111 = sshll.u32 %s1102, 4
          %s1112 = int_to_ptr.vmem [resolvable:$true] %s1111
          %s1113 = sshll.u32 %s1110, 4
          %s1114 = int_to_ptr.hbm [resolvable:$true] %s1113
          %1119 = dma.vmem_to_hbm [thread:$0]  %s1112, 512, %s1114, %s1099, 128, 128, 8
        $region44: #{tpu_custom_call.1} parent=35 // pred_fallthru
          _
      $region36: #{tpu_custom_call.1} parent=5 // pred_fallthru
        _
      %p1120 = scmp.le.s32.totalorder 2, %s14
      // Predicated region
      $region45: #{tpu_custom_call.1} parent=5 // pred_check
        %p1121 = pneg %p1120
      $region46: #{tpu_custom_call.1} parent=5 // pred_check_branch
        %1123 = sbr.rel (%p1121) target = $region48
      $region47: #{tpu_custom_call.1} parent=5 // pred_region
        %s1124 = ssub.s32 %s14, 2
        // Predicated region
        $region49: #{tpu_custom_call.1} parent=47 // pred_check
          %p1125 = pneg %p132
        $region50: #{tpu_custom_call.1} parent=47 // pred_check_branch
          %1127 = sbr.rel (%p1125) target = $region52
        $region51: #{tpu_custom_call.1} parent=47 // pred_region
          %s1128 = sand.u32 %s117, 1
          %s1129 = scalar_lea.sflag [#allocation4], %s1128
          %s1130 = sand.u32 %s117, 1
          %s1131 = smul.addr %s1130, 32
          %s1132 = scalar_lea.vmem [#allocation5], %s1131
          %1134 = dma.done %s1129, 512
        $region52: #{tpu_custom_call.1} parent=47 // pred_fallthru
          _
      $region48: #{tpu_custom_call.1} parent=5 // pred_fallthru
        _
    $region6: #{tpu_custom_call.1} parent=1 // loop_footer
      %s18 = sadd.s32 1, %s14
    $region7: #{tpu_custom_call.1} parent=1 // loop_footer_branch
      %13 = sbr.rel target = $region3
    $region8: #{tpu_custom_call.1} parent=1 // loop_exit
      _
    %1135 = vsyncpa [#allocation3], 1
    %s1136 = scalar_lea.sflag [#allocation3], 1
    %1137 = vsyncpa %s1136, 1
    %1138 = vsyncpa [#allocation4], 1
    %s1139 = scalar_lea.sflag [#allocation4], 1
    %1140 = vsyncpa %s1139, 1

</llo_original>
